<compile_context>
chip_gen: v6e
topology: v6e:2x2x1
jax: 0.10.0
libtpu: 0.0.40
codegen_flags: <defaults>
</compile_context>

<pallas_src>
from functools import partial

import jax
import jax.numpy as jnp
from jax.experimental import pallas as pl
from jax.experimental.pallas import tpu as pltpu

_LANES = 128


def _default_tile_rows():
    """Rows of 128 lanes per grid step, chosen per TPU generation."""
    try:
        kind = jax.devices()[0].device_kind.lower()
    except Exception:
        return 2048
    if "v6" in kind or "v7" in kind or "7x" in kind:
        return 4096  # fits 32 MiB scoped-VMEM default with double buffering
    return 2048      # safe under v5e's 16 MiB scoped-VMEM default


def _sublanes_for(*arrays):
    """Dtype-aware sublane packing: 8 for 4-byte, 16 for 2-byte, 32 for 1-byte."""
    min_itemsize = min(int(a.dtype.itemsize) for a in arrays)
    return max(8, 32 // max(1, min_itemsize))


def _mse_accum_kernel(c_ref, a_ref, l_ref, c_out_ref, a_out_ref, *,
                      n_sub, tile_sub, needs_mask):
    """Accumulate per-lane squared-error sums for both prediction streams.

    Input blocks:  (tile_sub, sublanes, 128) in native dtype.
    Output blocks: (sublanes, 128) f32, resident across the grid (accumulator).
    """
    i = pl.program_id(0)

    @pl.when(i == 0)
    def _():
        c_out_ref[...] = jnp.zeros_like(c_out_ref)
        a_out_ref[...] = jnp.zeros_like(a_out_ref)

    lbl = l_ref[...].astype(jnp.float32)
    dc = c_ref[...].astype(jnp.float32) - lbl
    da = a_ref[...].astype(jnp.float32) - lbl
    sq_c = dc * dc
    sq_a = da * da

    if needs_mask:
        # Last grid tile may extend past the array; its trailing rows hold
        # unspecified data.  Mask them (row count is static per grid index).
        valid_rows = n_sub - i * tile_sub
        rows = jax.lax.broadcasted_iota(jnp.int32, sq_c.shape, 0)
        keep = rows < valid_rows
        sq_c = jnp.where(keep, sq_c, 0.0)
        sq_a = jnp.where(keep, sq_a, 0.0)

    # Reduce over the leading (non-lane, non-sublane) axis -> pure VPU adds.
    c_out_ref[...] += jnp.sum(sq_c, axis=0)
    a_out_ref[...] += jnp.sum(sq_a, axis=0)


def _squared_error_sums(dec_out_content, dec_out_audio, label, *,
                        tile_rows=None, vmem_limit_bytes=None):
    """Returns (sum_sq_err_content, sum_sq_err_audio) as f32 scalars."""
    assert dec_out_content.shape == label.shape == dec_out_audio.shape
    n = int(label.size)
    if n == 0:
        raise ValueError("ComposeLossOneHot: label must be non-empty")

    sublanes = _sublanes_for(dec_out_content, dec_out_audio, label)
    subblock = sublanes * _LANES          # elements per (sublanes, 128) slab
    n_sub = n // subblock                 # full slabs handled by the kernel
    n_main = n_sub * subblock

    cf = dec_out_content.reshape(-1)
    af = dec_out_audio.reshape(-1)
    lf = label.reshape(-1)

    c_sum = jnp.float32(0.0)
    a_sum = jnp.float32(0.0)

    if n_sub > 0:
        if tile_rows is None:
            tile_rows = _default_tile_rows()
        tile_rows = max(sublanes, (int(tile_rows) // sublanes) * sublanes)
        tile_sub = min(n_sub, tile_rows // sublanes)
        num_tiles = -(-n_sub // tile_sub)
        needs_mask = (n_sub % tile_sub) != 0

        # Auto-raise the scoped-VMEM limit only when the requested tiles need it.
        est_in_bytes = sum(2 * tile_sub * sublanes * _LANES * int(x.dtype.itemsize)
                           for x in (dec_out_content, dec_out_audio, label))
        if vmem_limit_bytes is None and est_in_bytes > (20 << 20):
            vmem_limit_bytes = int(est_in_bytes) + (8 << 20)

        def to3d(x_flat):
            xm = x_flat[:n_main] if n_main != n else x_flat
            return xm.reshape(n_sub, sublanes, _LANES)

        kernel = partial(_mse_accum_kernel, n_sub=n_sub, tile_sub=tile_sub,
                         needs_mask=needs_mask)
        out_sh = jax.ShapeDtypeStruct((sublanes, _LANES), jnp.float32)
        in_spec = pl.BlockSpec((tile_sub, sublanes, _LANES), lambda i: (i, 0, 0))
        out_spec = pl.BlockSpec((sublanes, _LANES), lambda i: (0, 0))

        c_part, a_part = pl.pallas_call(
            kernel,
            out_shape=(out_sh, out_sh),
            grid_spec=pltpu.PrefetchScalarGridSpec(
                num_scalar_prefetch=0,
                grid=(num_tiles,),
                in_specs=[in_spec, in_spec, in_spec],
                out_specs=[out_spec, out_spec],
            ),
            compiler_params=pltpu.CompilerParams(
                # Grid axis is a reduction into resident output blocks.
                dimension_semantics=("arbitrary",),
                vmem_limit_bytes=vmem_limit_bytes,
            ),
        )(to3d(cf), to3d(af), to3d(lf))

        # Tiny: 2 x (sublanes, 128) f32; fuses with the final scalar math.
        c_sum = c_sum + jnp.sum(c_part)
        a_sum = a_sum + jnp.sum(a_part)

    if n_main != n:
        # < one sub-block (< 4096 elements) tail handled in plain jnp.
        tc = cf[n_main:].astype(jnp.float32)
        ta = af[n_main:].astype(jnp.float32)
        tl = lf[n_main:].astype(jnp.float32)
        c_sum = c_sum + jnp.sum((tc - tl) ** 2)
        a_sum = a_sum + jnp.sum((ta - tl) ** 2)

    return c_sum, a_sum


def compose_loss_one_hot(output, label, text_label=None, id_label=None, *,
                         recon_loss_w=1.0, tile_rows=None,
                         vmem_limit_bytes=None):
    """JAX/Pallas equivalent of ComposeLossOneHot.forward.

    output = (content_code, style_code, audio_feature,
              dec_out_content, dec_out_audio)
    text_label / id_label are accepted for signature parity and ignored
    (unused in the reference forward).
    """
    (_content_code, _style_code, _audio_feature,
     dec_out_content, dec_out_audio) = output

    c_sum, a_sum = _squared_error_sums(
        dec_out_content, dec_out_audio, label,
        tile_rows=tile_rows, vmem_limit_bytes=vmem_limit_bytes)

    n_elems = jnp.float32(label.size)
    content_recon_loss = recon_loss_w * (c_sum / n_elems)
    audio_recon_loss = recon_loss_w * (a_sum / n_elems)
    loss = content_recon_loss + audio_recon_loss

    return {
        "loss": loss,
        "content_recon_loss": content_recon_loss,
        "audio_recon_loss": audio_recon_loss,
    }


if __name__ == "__main__":
    key = jax.random.PRNGKey(0)
    ks = jax.random.split(key, 9)

    # Small shapes consistent with an NCHW decoder output.
    B, C, H, W = 2, 4, 16, 16          # 2048 elements (sub-block aligned)
    hidden = 32

    # Unused-by-forward codes/features (still part of the `output` tuple).
    content_code = jax.random.normal(ks[0], (B, hidden), dtype=jnp.float32)
    style_code = jax.random.normal(ks[1], (B, hidden), dtype=jnp.float32)
    audio_feature = jax.random.normal(ks[2], (B, hidden), dtype=jnp.float32)

    dec_out_content = jax.random.normal(ks[3], (B, C, H, W), dtype=jnp.float32)
    dec_out_audio = jax.random.normal(ks[4], (B, C, H, W), dtype=jnp.float32)
    label = jax.random.normal(ks[5], (B, C, H, W), dtype=jnp.float32)

    recon_loss_w = 1.0  # cfg.recon_loss.w (deterministic synthetic config)
    output = (content_code, style_code, audio_feature,
              dec_out_content, dec_out_audio)

    result = compose_loss_one_hot(output, label, recon_loss_w=recon_loss_w)
    result = jax.tree_util.tree_map(jax.block_until_ready, result)

    ref_c = recon_loss_w * jnp.mean((dec_out_content - label) ** 2)
    ref_a = recon_loss_w * jnp.mean((dec_out_audio - label) ** 2)
    assert jnp.allclose(result["content_recon_loss"], ref_c, rtol=1e-5, atol=1e-5)
    assert jnp.allclose(result["audio_recon_loss"], ref_a, rtol=1e-5, atol=1e-5)
    assert jnp.allclose(result["loss"], ref_c + ref_a, rtol=1e-5, atol=1e-5)

    # Exercise the multi-tile accumulator, the in-kernel row mask (partial last
    # tile) and the sub-block tail path: 3*5*37*29 = 16095 elements
    # -> 15 aligned sub-blocks (4 tiles of 4 at tile_rows=32, last has 3 rows)
    #    + a 735-element tail handled in jnp.
    odd_shape = (3, 5, 37, 29)
    p_c = jax.random.normal(ks[6], odd_shape, dtype=jnp.float32)
    p_a = jax.random.normal(ks[7], odd_shape, dtype=jnp.float32)
    p_l = jax.random.normal(ks[8], odd_shape, dtype=jnp.float32)
    odd_out = (content_code, style_code, audio_feature, p_c, p_a)
    odd_res = compose_loss_one_hot(odd_out, p_l, recon_loss_w=0.5, tile_rows=32)
    odd_res = jax.tree_util.tree_map(jax.block_until_ready, odd_res)
    ref_oc = 0.5 * jnp.mean((p_c - p_l) ** 2)
    ref_oa = 0.5 * jnp.mean((p_a - p_l) ** 2)
    assert jnp.allclose(odd_res["content_recon_loss"], ref_oc, rtol=1e-5, atol=1e-5)
    assert jnp.allclose(odd_res["audio_recon_loss"], ref_oa, rtol=1e-5, atol=1e-5)
    assert jnp.allclose(odd_res["loss"], ref_oc + ref_oa, rtol=1e-5, atol=1e-5)

    # Exercise the dtype-aware (16-sublane) packing path with bf16 inputs.
    b_c = dec_out_content.astype(jnp.bfloat16)
    b_a = dec_out_audio.astype(jnp.bfloat16)
    b_l = label.astype(jnp.bfloat16)
    bf_out = (content_code, style_code, audio_feature, b_c, b_a)
    bf_res = compose_loss_one_hot(bf_out, b_l, recon_loss_w=recon_loss_w)
    bf_res = jax.tree_util.tree_map(jax.block_until_ready, bf_res)
    ref_bc = recon_loss_w * jnp.mean(
        (b_c.astype(jnp.float32) - b_l.astype(jnp.float32)) ** 2)
    ref_ba = recon_loss_w * jnp.mean(
        (b_a.astype(jnp.float32) - b_l.astype(jnp.float32)) ** 2)
    assert jnp.allclose(bf_res["content_recon_loss"], ref_bc, rtol=1e-5, atol=1e-5)
    assert jnp.allclose(bf_res["audio_recon_loss"], ref_ba, rtol=1e-5, atol=1e-5)
    assert jnp.allclose(bf_res["loss"], ref_bc + ref_ba, rtol=1e-5, atol=1e-5)

    print("KERNEL_OK")
</pallas_src>

<mosaic_0001>
module attributes {stable_mosaic.version = 11 : i64} {
  func.func @_mse_accum_kernel(%arg0: i32, %arg1: memref<2x8x128xf32, #tpu.memory_space<vmem>>, %arg2: memref<2x8x128xf32, #tpu.memory_space<vmem>>, %arg3: memref<2x8x128xf32, #tpu.memory_space<vmem>>, %arg4: memref<8x128xf32, #tpu.memory_space<vmem>>, %arg5: memref<8x128xf32, #tpu.memory_space<vmem>>) attributes {dimension_semantics = [#tpu.dimension_semantics<arbitrary>], iteration_bounds = array<i64: 1>, scalar_prefetch = 0 : i64, scratch_operands = 0 : i64, tpu.core_type = #tpu.core_type<tc>, window_params = [{transform_indices = @transform_0, window_bounds = array<i64: 2, 8, 128>}, {transform_indices = @transform_1, window_bounds = array<i64: 2, 8, 128>}, {transform_indices = @transform_2, window_bounds = array<i64: 2, 8, 128>}, {pipeline_mode = #tpu.pipeline_mode<synchronous>, transform_indices = @transform_3, window_bounds = array<i64: 8, 128>}, {pipeline_mode = #tpu.pipeline_mode<synchronous>, transform_indices = @transform_4, window_bounds = array<i64: 8, 128>}]} {
    %c0_i32 = arith.constant 0 : i32
    %0 = arith.cmpi eq, %arg0, %c0_i32 : i32
    %1 = arith.extui %0 : i1 to i32
    %c0_i32_0 = arith.constant 0 : i32
    %2 = arith.cmpi ne, %1, %c0_i32_0 : i32
    scf.if %2 {
      %cst_18 = arith.constant 0.000000e+00 : f32
      %18 = vector.broadcast %cst_18 : f32 to vector<8x128xf32>
      %c0_19 = arith.constant 0 : index
      %c0_20 = arith.constant 0 : index
      %19 = vector.load %arg4[%c0_19, %c0_20] : memref<8x128xf32, #tpu.memory_space<vmem>>, vector<8x128xf32>
      tpu.vector_store %arg4[%c0_19, %c0_20], %18 {strides = array<i32>} : memref<8x128xf32, #tpu.memory_space<vmem>>, vector<8x128xf32>,
      %cst_21 = arith.constant 0.000000e+00 : f32
      %20 = vector.broadcast %cst_21 : f32 to vector<8x128xf32>
      %c0_22 = arith.constant 0 : index
      %c0_23 = arith.constant 0 : index
      %21 = vector.load %arg5[%c0_22, %c0_23] : memref<8x128xf32, #tpu.memory_space<vmem>>, vector<8x128xf32>
      tpu.vector_store %arg5[%c0_22, %c0_23], %20 {strides = array<i32>} : memref<8x128xf32, #tpu.memory_space<vmem>>, vector<8x128xf32>,
    } else {
    }
    %c0 = arith.constant 0 : index
    %c0_1 = arith.constant 0 : index
    %c0_2 = arith.constant 0 : index
    %3 = vector.load %arg3[%c0, %c0_1, %c0_2] : memref<2x8x128xf32, #tpu.memory_space<vmem>>, vector<2x8x128xf32>
    %c0_3 = arith.constant 0 : index
    %c0_4 = arith.constant 0 : index
    %c0_5 = arith.constant 0 : index
    %4 = vector.load %arg1[%c0_3, %c0_4, %c0_5] : memref<2x8x128xf32, #tpu.memory_space<vmem>>, vector<2x8x128xf32>
    %5 = arith.subf %4, %3 : vector<2x8x128xf32>
    %c0_6 = arith.constant 0 : index
    %c0_7 = arith.constant 0 : index
    %c0_8 = arith.constant 0 : index
    %6 = vector.load %arg2[%c0_6, %c0_7, %c0_8] : memref<2x8x128xf32, #tpu.memory_space<vmem>>, vector<2x8x128xf32>
    %7 = arith.subf %6, %3 : vector<2x8x128xf32>
    %8 = arith.mulf %5, %5 : vector<2x8x128xf32>
    %9 = arith.mulf %7, %7 : vector<2x8x128xf32>
    %c0_9 = arith.constant 0 : index
    %c0_10 = arith.constant 0 : index
    %10 = vector.load %arg4[%c0_9, %c0_10] : memref<8x128xf32, #tpu.memory_space<vmem>>, vector<8x128xf32>
    %cst = arith.constant dense<0.000000e+00> : vector<8x128xf32>
    %11 = vector.multi_reduction <add>, %8, %cst [0] : vector<2x8x128xf32> to vector<8x128xf32>
    %12 = arith.addf %10, %11 : vector<8x128xf32>
    %c0_11 = arith.constant 0 : index
    %c0_12 = arith.constant 0 : index
    %13 = vector.load %arg4[%c0_11, %c0_12] : memref<8x128xf32, #tpu.memory_space<vmem>>, vector<8x128xf32>
    tpu.vector_store %arg4[%c0_11, %c0_12], %12 {strides = array<i32>} : memref<8x128xf32, #tpu.memory_space<vmem>>, vector<8x128xf32>,
    %c0_13 = arith.constant 0 : index
    %c0_14 = arith.constant 0 : index
    %14 = vector.load %arg5[%c0_13, %c0_14] : memref<8x128xf32, #tpu.memory_space<vmem>>, vector<8x128xf32>
    %cst_15 = arith.constant dense<0.000000e+00> : vector<8x128xf32>
    %15 = vector.multi_reduction <add>, %9, %cst_15 [0] : vector<2x8x128xf32> to vector<8x128xf32>
    %16 = arith.addf %14, %15 : vector<8x128xf32>
    %c0_16 = arith.constant 0 : index
    %c0_17 = arith.constant 0 : index
    %17 = vector.load %arg5[%c0_16, %c0_17] : memref<8x128xf32, #tpu.memory_space<vmem>>, vector<8x128xf32>
    tpu.vector_store %arg5[%c0_16, %c0_17], %16 {strides = array<i32>} : memref<8x128xf32, #tpu.memory_space<vmem>>, vector<8x128xf32>,
    return
  }
  func.func @transform_0(%arg0: i32) -> (i32, i32, i32) {
    %c0_i32 = arith.constant 0 : i32
    %c0_i32_0 = arith.constant 0 : i32
    %c0_i32_1 = arith.constant 0 : i32
    return %arg0, %c0_i32, %c0_i32_0 : i32, i32, i32
  }
  func.func @transform_1(%arg0: i32) -> (i32, i32, i32) {
    %c0_i32 = arith.constant 0 : i32
    %c0_i32_0 = arith.constant 0 : i32
    %c0_i32_1 = arith.constant 0 : i32
    return %arg0, %c0_i32, %c0_i32_0 : i32, i32, i32
  }
  func.func @transform_2(%arg0: i32) -> (i32, i32, i32) {
    %c0_i32 = arith.constant 0 : i32
    %c0_i32_0 = arith.constant 0 : i32
    %c0_i32_1 = arith.constant 0 : i32
    return %arg0, %c0_i32, %c0_i32_0 : i32, i32, i32
  }
  func.func @transform_3(%arg0: i32) -> (i32, i32) {
    %c0_i32 = arith.constant 0 : i32
    %c0_i32_0 = arith.constant 0 : i32
    %c0_i32_1 = arith.constant 0 : i32
    return %c0_i32, %c0_i32_0 : i32, i32
  }
  func.func @transform_4(%arg0: i32) -> (i32, i32) {
    %c0_i32 = arith.constant 0 : i32
    %c0_i32_0 = arith.constant 0 : i32
    %c0_i32_1 = arith.constant 0 : i32
    return %c0_i32, %c0_i32_0 : i32, i32
  }
}

</mosaic_0001>

<llo_original>
// kernel: tpu_custom_call.1
$region0: #{tpu_custom_call.1}
  #allocation0 [shape = 'u32[]', space=smem, size = 0x4, offset = 0x4, fixed_abs, tag = 'smem constant byte address 0x4 - core index']
  #allocation1 [shape = 'u32[144,128]{1,0:T(1,128)}', space=vmem, size = 0x12000, scoped, tag = 'internal scratch']
  %s0 = inlined_call_operand.hbm [shape: f32[2,8,128], index: 0, kind: input, shape index: {}]
  %s1 = inlined_call_operand.hbm [shape: f32[2,8,128], index: 1, kind: input, shape index: {}]
  %s2 = inlined_call_operand.hbm [shape: f32[2,8,128], index: 2, kind: input, shape index: {}]
  %s3 = inlined_call_operand.hbm [shape: f32[8,128], index: 3, kind: output, shape index: {0}]
  %s4 = inlined_call_operand.hbm [shape: f32[8,128], index: 4, kind: output, shape index: {1}]
  %5 = xla_tuple %s3, %s4
  %s6 = sld [smem:[#allocation0]]
  $region46: #{tpu_custom_call.1} parent=0
    _
  %s8 = ssub.s32 1, %s6
  %s9 = scalar_select 0, %s8, %s6
  $region1: #{tpu_custom_call.1} parent=0
    #allocation2 [shape = 'u8[8192]{0}', space=vmem, size = 0x2000, scoped, tag = 'input window, operand 0, single buffered']
    #allocation3 [shape = 's32[1]{0}', space=sflag, size = 0x4, scoped, tag = 'scoped memory for tpu_custom_call.1']
    #allocation4 [shape = 's32[1]{0}', space=sflag, size = 0x4, scoped, tag = 'scoped memory for tpu_custom_call.1']
    #allocation5 [shape = 'u8[8192]{0}', space=vmem, size = 0x2000, scoped, tag = 'input window, operand 1, single buffered']
    #allocation6 [shape = 's32[1]{0}', space=sflag, size = 0x4, scoped, tag = 'scoped memory for tpu_custom_call.1']
    #allocation7 [shape = 'u8[8192]{0}', space=vmem, size = 0x2000, scoped, tag = 'input window, operand 2, single buffered']
    #allocation8 [shape = 'u8[4096]{0}', space=vmem, size = 0x1000, scoped, tag = 'output window, operand 0, single buffered']
    #allocation9 [shape = 'u8[4096]{0}', space=vmem, size = 0x1000, scoped, tag = 'output window, operand 1, single buffered']
    #allocation10 [shape = 's32[1]{0}', space=sflag, size = 0x4, scoped, tag = 'scoped memory for tpu_custom_call.1']
    %10 = vsyncpa [#allocation3], 0
    %11 = vsyncpa [#allocation6], 0
    %12 = vsyncpa [#allocation4], 0
    %13 = vsyncpa [#allocation10], 0
    // Predicated region
    $region2: #{tpu_custom_call.1} parent=1 // pred_check
      _
    $region3: #{tpu_custom_call.1} parent=1 // pred_check_branch
      %15 = sbr.rel (0) target = $region5
    $region4: #{tpu_custom_call.1} parent=1 // pred_region
      %s17 = ssub.s32 256, 256
      %18 = vsyncadd [#allocation3], %s17
      %s19 = sshll.u32 [#allocation2], 4
      %s20 = int_to_ptr.vmem [resolvable:$true] %s19
      %25 = dma.hbm_to_vmem [thread:$0]  %s0, 256, %s20, [#allocation3], 128, 128, 8
    $region5: #{tpu_custom_call.1} parent=1 // pred_fallthru
      _
    // Predicated region
    $region6: #{tpu_custom_call.1} parent=1 // pred_check
      _
    $region7: #{tpu_custom_call.1} parent=1 // pred_check_branch
      %27 = sbr.rel (0) target = $region9
    $region8: #{tpu_custom_call.1} parent=1 // pred_region
      %s29 = ssub.s32 256, 256
      %30 = vsyncadd [#allocation6], %s29
      %s31 = sshll.u32 [#allocation5], 4
      %s32 = int_to_ptr.vmem [resolvable:$true] %s31
      %37 = dma.hbm_to_vmem [thread:$0]  %s1, 256, %s32, [#allocation6], 128, 128, 8
    $region9: #{tpu_custom_call.1} parent=1 // pred_fallthru
      _
    // Predicated region
    $region10: #{tpu_custom_call.1} parent=1 // pred_check
      _
    $region11: #{tpu_custom_call.1} parent=1 // pred_check_branch
      %39 = sbr.rel (0) target = $region13
    $region12: #{tpu_custom_call.1} parent=1 // pred_region
      %s41 = ssub.s32 256, 256
      %42 = vsyncadd [#allocation6], %s41
      %s43 = sshll.u32 [#allocation7], 4
      %s44 = int_to_ptr.vmem [resolvable:$true] %s43
      %49 = dma.hbm_to_vmem [thread:$0]  %s2, 256, %s44, [#allocation6], 128, 128, 8
    $region13: #{tpu_custom_call.1} parent=1 // pred_fallthru
      _
    // Predicated region
    $region14: #{tpu_custom_call.1} parent=1 // pred_check
      _
    $region15: #{tpu_custom_call.1} parent=1 // pred_check_branch
      %51 = sbr.rel (0) target = $region17
    $region16: #{tpu_custom_call.1} parent=1 // pred_region
      %52 = dma.done [#allocation3], 256
    $region17: #{tpu_custom_call.1} parent=1 // pred_fallthru
      _
    // Predicated region
    $region18: #{tpu_custom_call.1} parent=1 // pred_check
      _
    $region19: #{tpu_custom_call.1} parent=1 // pred_check_branch
      %54 = sbr.rel (0) target = $region21
    $region20: #{tpu_custom_call.1} parent=1 // pred_region
      %55 = dma.done [#allocation6], 256
    $region21: #{tpu_custom_call.1} parent=1 // pred_fallthru
      _
    // Predicated region
    $region22: #{tpu_custom_call.1} parent=1 // pred_check
      _
    $region23: #{tpu_custom_call.1} parent=1 // pred_check_branch
      %57 = sbr.rel (0) target = $region25
    $region24: #{tpu_custom_call.1} parent=1 // pred_region
      %58 = dma.done [#allocation6], 256
    $region25: #{tpu_custom_call.1} parent=1 // pred_fallthru
      _
    %p59 = scmp.eq.s32.totalorder 0, 0
    // Predicated region
    $region26: #{tpu_custom_call.1} parent=1 // pred_check
      %p60 = pneg %p59
    $region27: #{tpu_custom_call.1} parent=1 // pred_check_branch
      %62 = sbr.rel (%p60) target = $region29
    $region28: #{tpu_custom_call.1} parent=1 // pred_region
      %63 = vst [vmem:[#allocation8] sm:$0xff] 0.0
      %64 = vst [vmem:[#allocation9] sm:$0xff] 0.0
    $region29: #{tpu_custom_call.1} parent=1 // pred_fallthru
      _
    %v65 = vld [vmem:[#allocation7] sm:$0xff]
    %v66 = vld [vmem:[#allocation7 + $0x8] sm:$0xff]
    %v67 = vld [vmem:[#allocation2] sm:$0xff]
    %v68 = vld [vmem:[#allocation2 + $0x8] sm:$0xff]
    %v69 = vsub.f32 %v67, %v65
    %v70 = vsub.f32 %v68, %v66
    %v71 = vld [vmem:[#allocation5] sm:$0xff]
    %v72 = vld [vmem:[#allocation5 + $0x8] sm:$0xff]
    %v73 = vsub.f32 %v71, %v65
    %v74 = vsub.f32 %v72, %v66
    %v75 = vmul.f32 %v69, %v69
    %v76 = vmul.f32 %v70, %v70
    %v77 = vmul.f32 %v73, %v73
    %v78 = vmul.f32 %v74, %v74
    %v79 = vld [vmem:[#allocation8] sm:$0xff]
    %v80 = vadd.f32 %v75, %v76
    %v81 = vadd.f32 %v79, %v80
    %82 = vst [vmem:[#allocation8] sm:$0xff] %v81
    %v83 = vld [vmem:[#allocation9] sm:$0xff]
    %v84 = vadd.f32 %v77, %v78
    %v85 = vadd.f32 %v83, %v84
    %86 = vst [vmem:[#allocation9] sm:$0xff] %v85
    // Predicated region
    $region30: #{tpu_custom_call.1} parent=1 // pred_check
      _
    $region31: #{tpu_custom_call.1} parent=1 // pred_check_branch
      %88 = sbr.rel (0) target = $region33
    $region32: #{tpu_custom_call.1} parent=1 // pred_region
      %s90 = ssub.s32 128, 128
      %91 = vsyncadd [#allocation4], %s90
      %s93 = sshll.u32 [#allocation8], 4
      %s94 = int_to_ptr.vmem [resolvable:$true] %s93
      %96 = dma.vmem_to_hbm [thread:$0]  %s94, 128, %s3, [#allocation4]
    $region33: #{tpu_custom_call.1} parent=1 // pred_fallthru
      _
    // Predicated region
    $region34: #{tpu_custom_call.1} parent=1 // pred_check
      _
    $region35: #{tpu_custom_call.1} parent=1 // pred_check_branch
      %98 = sbr.rel (0) target = $region37
    $region36: #{tpu_custom_call.1} parent=1 // pred_region
      %s100 = ssub.s32 128, 128
      %101 = vsyncadd [#allocation10], %s100
      %s103 = sshll.u32 [#allocation9], 4
      %s104 = int_to_ptr.vmem [resolvable:$true] %s103
      %106 = dma.vmem_to_hbm [thread:$0]  %s104, 128, %s4, [#allocation10]
    $region37: #{tpu_custom_call.1} parent=1 // pred_fallthru
      _
    // Predicated region
    $region38: #{tpu_custom_call.1} parent=1 // pred_check
      _
    $region39: #{tpu_custom_call.1} parent=1 // pred_check_branch
      %108 = sbr.rel (0) target = $region41
    $region40: #{tpu_custom_call.1} parent=1 // pred_region
      %109 = dma.done [#allocation4], 128
    $region41: #{tpu_custom_call.1} parent=1 // pred_fallthru
      _
    // Predicated region
    $region42: #{tpu_custom_call.1} parent=1 // pred_check
      _
    $region43: #{tpu_custom_call.1} parent=1 // pred_check_branch
      %111 = sbr.rel (0) target = $region45
    $region44: #{tpu_custom_call.1} parent=1 // pred_region
      %112 = dma.done [#allocation10], 128
    $region45: #{tpu_custom_call.1} parent=1 // pred_fallthru
      _
    %113 = vsyncpa [#allocation3], 1
    %114 = vsyncpa [#allocation6], 1
    %115 = vsyncpa [#allocation4], 1
    %116 = vsyncpa [#allocation10], 1

</llo_original>
